<compile_context>
chip_gen: v7x
topology: tpu7x:2x2x1
jax: 0.10.0
libtpu: 0.0.40
codegen_flags: <defaults>
</compile_context>

<pallas_src>
import functools

import jax
import jax.numpy as jnp
from jax import lax
from jax.experimental import pallas as pl
from jax.experimental.pallas import tpu as pltpu


def _round_up(x, m):
    return ((x + m - 1) // m) * m


# dimension_numbers for A @ B^T (contract the minor dim of both operands).
_TRANS_B = (((1,), (1,)), ((), ()))


def _pick_batch_tiling(batch, max_batch_tile, target_steps):
    """Pick (batch_tile, padded_batch).

    - batch tile is a multiple of 128 (lane-dense output stores),
    - at least `target_steps` grid steps when the batch allows it (v7x
      megacore sharding + pipeline prologue/epilogue overlap),
    - padding waste bounded by spreading rows evenly over the steps instead
      of rounding the batch up to a full max-size tile.
    """
    b128 = _round_up(batch, 128)
    n_steps = max(target_steps, pl.cdiv(b128, max_batch_tile))
    n_steps = max(1, min(n_steps, b128 // 128))
    tb = _round_up(pl.cdiv(b128, n_steps), 128)
    tb = min(tb, max_batch_tile)
    b_pad = _round_up(b128, tb)
    return tb, b_pad


def _mlp_kernel(n_hidden, x_ref, *refs):
    """MLP body, lane-dense after the first matmul.

    x_ref : (TB, in_dim)  batch-major tile, exactly as it lives in HBM
    refs  : [W_0, b_0, ..., W_{nh-1}, b_{nh-1}, W_out, b_out, out_ref]
            W_i: (out_i, in_i) PyTorch layout, b_i: (out_i, 1)
    out   : (1, TB) lane-dense output tile (batch on the 128-lane axis)
    """
    out_ref = refs[-1]
    p = refs[:-1]

    # First hidden layer: h = relu(W0 @ x^T + b0).  The transpose of the
    # batch-major x tile is folded into the MXU pass via trans_b dot_general.
    w0 = p[0][...]                                    # (h0, in_dim)
    b0 = p[1][...]                                    # (h0, 1) -> lane bcast
    h = lax.dot_general(w0, x_ref[...], _TRANS_B,
                        preferred_element_type=jnp.float32) + b0
    h = jnp.maximum(h, 0.0)                           # (h0, TB)

    # Remaining hidden layers: standard lane-dense W @ h.
    for i in range(1, n_hidden):
        w = p[2 * i][...]                             # (h_i, h_{i-1})
        b = p[2 * i + 1][...]                         # (h_i, 1)
        h = jnp.dot(w, h, preferred_element_type=jnp.float32) + b
        h = jnp.maximum(h, 0.0)

    # Output layer (out_features == 1).
    w_out = p[2 * n_hidden][...]                      # (1, h_last)
    b_out = p[2 * n_hidden + 1][...]                  # (1, 1)
    y = jnp.dot(w_out, h, preferred_element_type=jnp.float32) + b_out
    out_ref[...] = y.astype(out_ref.dtype)            # unmasked (1, TB) store


def continuation_regressive_forward(x, params, *, max_batch_tile=16384,
                                    target_steps=4):
    """x: (B, dim_sequence, dim_features); params: list of (W, b) with W as
    (out_features, in_features) and b as (out_features, 1) (PyTorch layout).
    Last pair is the output layer (out_features == 1)."""
    B = x.shape[0]
    x2d = x.reshape(B, -1).astype(jnp.float32)        # flatten(start_dim=1)
    in_dim = x2d.shape[1]

    tb, b_pad = _pick_batch_tiling(B, max_batch_tile, target_steps)

    # Only a batch-axis zero-pad; fused into the kernel operand by XLA
    # (allow_input_fusion), so x is not round-tripped through HBM.
    x_p = x2d if b_pad == B else jnp.pad(x2d, ((0, b_pad - B), (0, 0)))

    n_hidden = len(params) - 1
    flat_params = []
    for (w, b) in params:
        flat_params.append(w)
        flat_params.append(b)

    # Resident weights/biases: constant block index -> fetched once.
    param_specs = [pl.BlockSpec(p.shape, lambda i: (0, 0)) for p in flat_params]

    # Advisory cost estimate for XLA's scheduler.
    flops = 0
    k = in_dim
    for (w, _) in params:
        flops += 2 * b_pad * k * w.shape[0]
        k = w.shape[0]
    bytes_accessed = (x_p.size + b_pad) * 4 + sum(int(p.size) * 4
                                                  for p in flat_params)

    kernel = functools.partial(_mlp_kernel, n_hidden)

    out = pl.pallas_call(
        kernel,
        out_shape=jax.ShapeDtypeStruct((1, b_pad), jnp.float32),
        grid=(b_pad // tb,),
        in_specs=[pl.BlockSpec((tb, in_dim), lambda i: (i, 0))] + param_specs,
        out_specs=pl.BlockSpec((1, tb), lambda i: (0, i)),
        compiler_params=pltpu.CompilerParams(
            dimension_semantics=("parallel",),
            # Explicit scoped-VMEM limit: above v5e's 16 MiB default, below
            # v7x's 64 MiB physical; actual use at tb=16K is ~30 MiB.
            vmem_limit_bytes=56 * 1024 * 1024,
            # Let XLA fuse the batch pad / flatten into the x operand.
            allow_input_fusion=[True] + [False] * len(flat_params),
        ),
        cost_estimate=pl.CostEstimate(
            flops=flops, transcendentals=0, bytes_accessed=bytes_accessed),
    )(x_p, *flat_params)

    # torch.squeeze on (B, 1): (B,) for B > 1, 0-d scalar for B == 1.
    return jnp.squeeze(out[:, :B])


def init_params(key, in_dim, dim_layers):
    """Deterministic init mirroring torch.nn.Linear defaults:
    U(-1/sqrt(fan_in), 1/sqrt(fan_in)).  W: (out, in), b: (out, 1)."""
    params = []
    dims = list(dim_layers) + [1]
    for out_dim in dims:
        key, kw, kb = jax.random.split(key, 3)
        bound = 1.0 / jnp.sqrt(jnp.float32(in_dim))
        w = jax.random.uniform(kw, (out_dim, in_dim), jnp.float32,
                               minval=-bound, maxval=bound)
        b = jax.random.uniform(kb, (out_dim, 1), jnp.float32,
                               minval=-bound, maxval=bound)
        params.append((w, b))
        in_dim = out_dim
    return params


if __name__ == "__main__":
    param_cfg = {
        "dim_sequence": 8,
        "dim_features": 4,
        "continuation_regressive_dim_layers": [32, 16],
    }
    B = 2
    S = param_cfg["dim_sequence"]
    F = param_cfg["dim_features"]
    in_dim = S * F

    key = jax.random.PRNGKey(0)
    key, kx = jax.random.split(key)
    x = jax.random.normal(kx, (B, S, F), jnp.float32)

    params = init_params(key, in_dim,
                         param_cfg["continuation_regressive_dim_layers"])

    fwd = jax.jit(continuation_regressive_forward)
    y = jax.block_until_ready(fwd(x, params))

    # Pure-JAX reference.
    def ref_forward(x, params):
        h = x.reshape(x.shape[0], -1)
        for (w, b) in params[:-1]:
            h = jnp.maximum(h @ w.T + b.T, 0.0)
        w, b = params[-1]
        return jnp.squeeze(h @ w.T + b.T)

    y_ref = ref_forward(x, params)
    assert y.shape == (B,), y.shape
    assert jnp.allclose(y, y_ref, atol=1e-5, rtol=1e-5)

    print("KERNEL_OK")
</pallas_src>

<mosaic_0001>
module attributes {stable_mosaic.version = 11 : i64} {
  func.func @_mlp_kernel(%arg0: i32, %arg1: memref<128x32xf32, #tpu.memory_space<vmem>>, %arg2: memref<32x32xf32, #tpu.memory_space<vmem>>, %arg3: memref<32x1xf32, #tpu.memory_space<vmem>>, %arg4: memref<16x32xf32, #tpu.memory_space<vmem>>, %arg5: memref<16x1xf32, #tpu.memory_space<vmem>>, %arg6: memref<1x16xf32, #tpu.memory_space<vmem>>, %arg7: memref<1x1xf32, #tpu.memory_space<vmem>>, %arg8: memref<1x128xf32, #tpu.memory_space<vmem>>) attributes {dimension_semantics = [#tpu.dimension_semantics<parallel>], iteration_bounds = array<i64: 1>, scalar_prefetch = 0 : i64, scratch_operands = 0 : i64, tpu.core_type = #tpu.core_type<tc>, window_params = [{transform_indices = @transform_0, window_bounds = array<i64: 128, 32>}, {pipeline_mode = #tpu.pipeline_mode<synchronous>, transform_indices = @transform_1, window_bounds = array<i64: 32, 32>}, {pipeline_mode = #tpu.pipeline_mode<synchronous>, transform_indices = @transform_2, window_bounds = array<i64: 32, 1>}, {pipeline_mode = #tpu.pipeline_mode<synchronous>, transform_indices = @transform_3, window_bounds = array<i64: 16, 32>}, {pipeline_mode = #tpu.pipeline_mode<synchronous>, transform_indices = @transform_4, window_bounds = array<i64: 16, 1>}, {pipeline_mode = #tpu.pipeline_mode<synchronous>, transform_indices = @transform_5, window_bounds = array<i64: 1, 16>}, {pipeline_mode = #tpu.pipeline_mode<synchronous>, transform_indices = @transform_6, window_bounds = array<i64: 1, 1>}, {transform_indices = @transform_7, window_bounds = array<i64: 1, 128>}]} {
    %c0 = arith.constant 0 : index
    %c0_0 = arith.constant 0 : index
    %0 = vector.load %arg2[%c0, %c0_0] : memref<32x32xf32, #tpu.memory_space<vmem>>, vector<32x32xf32>
    %c0_1 = arith.constant 0 : index
    %c0_2 = arith.constant 0 : index
    %1 = vector.load %arg3[%c0_1, %c0_2] : memref<32x1xf32, #tpu.memory_space<vmem>>, vector<32x1xf32>
    %c0_3 = arith.constant 0 : index
    %c0_4 = arith.constant 0 : index
    %2 = vector.load %arg1[%c0_3, %c0_4] : memref<128x32xf32, #tpu.memory_space<vmem>>, vector<128x32xf32>
    %cst = arith.constant dense<0.000000e+00> : vector<32x128xf32>
    %3 = tpu.matmul %0, %2, %cst {dimension_numbers = #tpu.dot_dimension_numbers<[1], [1], [0], [0], [0, 0, 1, 0], [], []>} : vector<32x32xf32>, vector<128x32xf32>, vector<32x128xf32> -> vector<32x128xf32>
    %4 = vector.broadcast %1 : vector<32x1xf32> to vector<32x128xf32>
    %5 = arith.addf %3, %4 : vector<32x128xf32>
    %cst_5 = arith.constant 0.000000e+00 : f32
    %6 = vector.broadcast %cst_5 : f32 to vector<32x128xf32>
    %7 = arith.maximumf %5, %6 : vector<32x128xf32>
    %c0_6 = arith.constant 0 : index
    %c0_7 = arith.constant 0 : index
    %8 = vector.load %arg4[%c0_6, %c0_7] : memref<16x32xf32, #tpu.memory_space<vmem>>, vector<16x32xf32>
    %c0_8 = arith.constant 0 : index
    %c0_9 = arith.constant 0 : index
    %9 = vector.load %arg5[%c0_8, %c0_9] : memref<16x1xf32, #tpu.memory_space<vmem>>, vector<16x1xf32>
    %cst_10 = arith.constant dense<0.000000e+00> : vector<16x128xf32>
    %10 = tpu.matmul %8, %7, %cst_10 {dimension_numbers = #tpu.dot_dimension_numbers<[1], [0], [0], [1], [0, 0, 1, 1], [], []>} : vector<16x32xf32>, vector<32x128xf32>, vector<16x128xf32> -> vector<16x128xf32>
    %11 = vector.broadcast %9 : vector<16x1xf32> to vector<16x128xf32>
    %12 = arith.addf %10, %11 : vector<16x128xf32>
    %cst_11 = arith.constant 0.000000e+00 : f32
    %13 = vector.broadcast %cst_11 : f32 to vector<16x128xf32>
    %14 = arith.maximumf %12, %13 : vector<16x128xf32>
    %c0_12 = arith.constant 0 : index
    %c0_13 = arith.constant 0 : index
    %15 = vector.load %arg6[%c0_12, %c0_13] : memref<1x16xf32, #tpu.memory_space<vmem>>, vector<1x16xf32>
    %c0_14 = arith.constant 0 : index
    %c0_15 = arith.constant 0 : index
    %16 = vector.load %arg7[%c0_14, %c0_15] : memref<1x1xf32, #tpu.memory_space<vmem>>, vector<1x1xf32>
    %cst_16 = arith.constant dense<0.000000e+00> : vector<1x128xf32>
    %17 = tpu.matmul %15, %14, %cst_16 {dimension_numbers = #tpu.dot_dimension_numbers<[1], [0], [0], [1], [0, 0, 1, 1], [], []>} : vector<1x16xf32>, vector<16x128xf32>, vector<1x128xf32> -> vector<1x128xf32>
    %18 = vector.broadcast %16 : vector<1x1xf32> to vector<1x128xf32>
    %19 = arith.addf %17, %18 : vector<1x128xf32>
    %c0_17 = arith.constant 0 : index
    %c0_18 = arith.constant 0 : index
    %20 = vector.load %arg8[%c0_17, %c0_18] : memref<1x128xf32, #tpu.memory_space<vmem>>, vector<1x128xf32>
    tpu.vector_store %arg8[%c0_17, %c0_18], %19 {strides = array<i32>} : memref<1x128xf32, #tpu.memory_space<vmem>>, vector<1x128xf32>,
    return
  }
  func.func @transform_0(%arg0: i32) -> (i32, i32) {
    %c0_i32 = arith.constant 0 : i32
    %c0_i32_0 = arith.constant 0 : i32
    return %arg0, %c0_i32 : i32, i32
  }
  func.func @transform_1(%arg0: i32) -> (i32, i32) {
    %c0_i32 = arith.constant 0 : i32
    %c0_i32_0 = arith.constant 0 : i32
    %c0_i32_1 = arith.constant 0 : i32
    return %c0_i32, %c0_i32_0 : i32, i32
  }
  func.func @transform_2(%arg0: i32) -> (i32, i32) {
    %c0_i32 = arith.constant 0 : i32
    %c0_i32_0 = arith.constant 0 : i32
    %c0_i32_1 = arith.constant 0 : i32
    return %c0_i32, %c0_i32_0 : i32, i32
  }
  func.func @transform_3(%arg0: i32) -> (i32, i32) {
    %c0_i32 = arith.constant 0 : i32
    %c0_i32_0 = arith.constant 0 : i32
    %c0_i32_1 = arith.constant 0 : i32
    return %c0_i32, %c0_i32_0 : i32, i32
  }
  func.func @transform_4(%arg0: i32) -> (i32, i32) {
    %c0_i32 = arith.constant 0 : i32
    %c0_i32_0 = arith.constant 0 : i32
    %c0_i32_1 = arith.constant 0 : i32
    return %c0_i32, %c0_i32_0 : i32, i32
  }
  func.func @transform_5(%arg0: i32) -> (i32, i32) {
    %c0_i32 = arith.constant 0 : i32
    %c0_i32_0 = arith.constant 0 : i32
    %c0_i32_1 = arith.constant 0 : i32
    return %c0_i32, %c0_i32_0 : i32, i32
  }
  func.func @transform_6(%arg0: i32) -> (i32, i32) {
    %c0_i32 = arith.constant 0 : i32
    %c0_i32_0 = arith.constant 0 : i32
    %c0_i32_1 = arith.constant 0 : i32
    return %c0_i32, %c0_i32_0 : i32, i32
  }
  func.func @transform_7(%arg0: i32) -> (i32, i32) {
    %c0_i32 = arith.constant 0 : i32
    %c0_i32_0 = arith.constant 0 : i32
    return %c0_i32, %arg0 : i32, i32
  }
}

</mosaic_0001>

<llo_original>
// kernel: continuation_regressive_forward.2
$region0: #{continuation_regressive_forward.2}
  #allocation0 [shape = 'u32[]', space=smem, size = 0x4, offset = 0x4, fixed_abs, tag = 'smem constant byte address 0x4 - core index']
  #allocation1 [shape = 'u32[144,128]{1,0:T(1,128)}', space=vmem, size = 0x12000, scoped, tag = 'internal scratch']
  #allocation2 [shape = 'u32[2048]{0}', space=vmem, size = 0x2000, scoped, tag = 'scoped memory for continuation_regressive_forward.2']
  #allocation3 [shape = 'u32[2048]{0}', space=vmem, size = 0x2000, scoped, tag = 'scoped memory for continuation_regressive_forward.2']
  #allocation4 [shape = 'u32[2048]{0}', space=vmem, size = 0x2000, scoped, tag = 'scoped memory for continuation_regressive_forward.2']
  #allocation5 [shape = 'u32[2048]{0}', space=vmem, size = 0x2000, scoped, tag = 'scoped memory for continuation_regressive_forward.2']
  #allocation6 [shape = 'u32[2048]{0}', space=vmem, size = 0x2000, scoped, tag = 'scoped memory for continuation_regressive_forward.2']
  #allocation7 [shape = 'f32[1,1]{1,0:T(1,128)S(1)}', space=vmem, size = 0x200, scoped, tag = 'scoped memory for continuation_regressive_forward.2']
  %s0 = inlined_call_operand.vmem [shape: f32[32,32], index: 0, kind: input, shape index: {}]
  %s1 = inlined_call_operand.vmem [shape: f32[32,1], index: 1, kind: input, shape index: {}]
  %s2 = inlined_call_operand.vmem [shape: f32[16,32], index: 2, kind: input, shape index: {}]
  %s3 = inlined_call_operand.vmem [shape: f32[16,1], index: 3, kind: input, shape index: {}]
  %s4 = inlined_call_operand.vmem [shape: f32[1,16], index: 4, kind: input, shape index: {}]
  %s5 = inlined_call_operand.<no memory space> [shape: f32[1,1], index: 5, kind: input, shape index: {}]
  %s6 = inlined_call_operand.vmem [shape: f32[2,32], index: 6, kind: input, shape index: {}]
  %s7 = inlined_call_operand.<no memory space> [shape: f32[], index: 7, kind: input, shape index: {}]
  %s8 = inlined_call_operand.vmem [shape: f32[1,128], index: 8, kind: output, shape index: {}]
  %s9 = sld [smem:[#allocation0]]
  $region38: #{continuation_regressive_forward.2} parent=0
    _
  %s11 = ssub.s32 1, %s9
  %s12 = scalar_select 0, %s11, %s9
  %v13 = vstv %s7
  %v14 = vstv %s5
  %15 = vst [vmem:[#allocation7] sm:$0x1] %v14
  $region1: #{continuation_regressive_forward.2} parent=0
    #allocation8 [shape = 'u8[65536]{0}', space=vmem, size = 0x10000, dematerialized = true, scoped, tag = 'FusionAdapter Buffer %fusion.1 = f32[128,32]{1,0:T(8,128)} fusion(%param_6.1, %param_7), kind=kLoop, calls=%fused_computation.1.clone, metadata={op_name="jit(continuation_regressive_forward)/jit(_pad)/pad" stack_frame_id=8}']
    // Predicated region
    $region2: #{continuation_regressive_forward.2} parent=1 // pred_check
      _
    $region3: #{continuation_regressive_forward.2} parent=1 // pred_check_branch
      %17 = sbr.rel (0) target = $region5
    $region4: #{continuation_regressive_forward.2} parent=1 // pred_region
      _
    $region5: #{continuation_regressive_forward.2} parent=1 // pred_fallthru
      _
    // Predicated region
    $region6: #{continuation_regressive_forward.2} parent=1 // pred_check
      _
    $region7: #{continuation_regressive_forward.2} parent=1 // pred_check_branch
      %19 = sbr.rel (0) target = $region9
    $region8: #{continuation_regressive_forward.2} parent=1 // pred_region
      _
    $region9: #{continuation_regressive_forward.2} parent=1 // pred_fallthru
      _
    // Predicated region
    $region10: #{continuation_regressive_forward.2} parent=1 // pred_check
      _
    $region11: #{continuation_regressive_forward.2} parent=1 // pred_check_branch
      %21 = sbr.rel (0) target = $region13
    $region12: #{continuation_regressive_forward.2} parent=1 // pred_region
      _
    $region13: #{continuation_regressive_forward.2} parent=1 // pred_fallthru
      _
    // Predicated region
    $region14: #{continuation_regressive_forward.2} parent=1 // pred_check
      _
    $region15: #{continuation_regressive_forward.2} parent=1 // pred_check_branch
      %23 = sbr.rel (0) target = $region17
    $region16: #{continuation_regressive_forward.2} parent=1 // pred_region
      _
    $region17: #{continuation_regressive_forward.2} parent=1 // pred_fallthru
      _
    // Predicated region
    $region18: #{continuation_regressive_forward.2} parent=1 // pred_check
      _
    $region19: #{continuation_regressive_forward.2} parent=1 // pred_check_branch
      %25 = sbr.rel (0) target = $region21
    $region20: #{continuation_regressive_forward.2} parent=1 // pred_region
      _
    $region21: #{continuation_regressive_forward.2} parent=1 // pred_fallthru
      _
    // Predicated region
    $region22: #{continuation_regressive_forward.2} parent=1 // pred_check
      _
    $region23: #{continuation_regressive_forward.2} parent=1 // pred_check_branch
      %27 = sbr.rel (0) target = $region25
    $region24: #{continuation_regressive_forward.2} parent=1 // pred_region
      _
    $region25: #{continuation_regressive_forward.2} parent=1 // pred_fallthru
      _
    // Predicated region
    $region26: #{continuation_regressive_forward.2} parent=1 // pred_check
      _
    $region27: #{continuation_regressive_forward.2} parent=1 // pred_check_branch
      %29 = sbr.rel (0) target = $region29
    $region28: #{continuation_regressive_forward.2} parent=1 // pred_region
      _
    $region29: #{continuation_regressive_forward.2} parent=1 // pred_fallthru
      _
    %v30 = vld [vmem:[%s6] sm:$0x3]
    %v31 = vlaneseq
    %v32 = vshrl.u32 %v31, 7
    %vm34 = vcmp.lt.s32.totalorder %v32, 2
    %v35 = vsel %vm34, %v30, %v13
    %v36 = vlaneseq
    %v37 = vand.u32 %v36, 127
    %vm39 = vcmp.lt.s32.totalorder %v37, 32
    %v40 = vsel %vm39, %v35, %v13
    %42 = vst [vmem:[#allocation8] sm:$0xff] %v40
    %s43 = scalar_lea.vmem [#allocation8], 8
    %45 = vst [vmem:[%s43] sm:$0xff] %v13
    %s46 = scalar_lea.vmem [#allocation8], 16
    %48 = vst [vmem:[%s46] sm:$0xff] %v13
    %s49 = scalar_lea.vmem [#allocation8], 24
    %51 = vst [vmem:[%s49] sm:$0xff] %v13
    %s52 = scalar_lea.vmem [#allocation8], 32
    %54 = vst [vmem:[%s52] sm:$0xff] %v13
    %s55 = scalar_lea.vmem [#allocation8], 40
    %57 = vst [vmem:[%s55] sm:$0xff] %v13
    %s58 = scalar_lea.vmem [#allocation8], 48
    %60 = vst [vmem:[%s58] sm:$0xff] %v13
    %s61 = scalar_lea.vmem [#allocation8], 56
    %63 = vst [vmem:[%s61] sm:$0xff] %v13
    %s64 = scalar_lea.vmem [#allocation8], 64
    %66 = vst [vmem:[%s64] sm:$0xff] %v13
    %s67 = scalar_lea.vmem [#allocation8], 72
    %69 = vst [vmem:[%s67] sm:$0xff] %v13
    %s70 = scalar_lea.vmem [#allocation8], 80
    %72 = vst [vmem:[%s70] sm:$0xff] %v13
    %s73 = scalar_lea.vmem [#allocation8], 88
    %75 = vst [vmem:[%s73] sm:$0xff] %v13
    %s76 = scalar_lea.vmem [#allocation8], 96
    %78 = vst [vmem:[%s76] sm:$0xff] %v13
    %s79 = scalar_lea.vmem [#allocation8], 104
    %81 = vst [vmem:[%s79] sm:$0xff] %v13
    %s82 = scalar_lea.vmem [#allocation8], 112
    %84 = vst [vmem:[%s82] sm:$0xff] %v13
    %s85 = scalar_lea.vmem [#allocation8], 120
    %87 = vst [vmem:[%s85] sm:$0xff] %v13
    %v88 = vld [vmem:[%s0] sm:$0xff]
    %v89 = vld [vmem:[%s0 + $0x8] sm:$0xff]
    %v90 = vld [vmem:[%s0 + $0x10] sm:$0xff]
    %v91 = vld [vmem:[%s0 + $0x18] sm:$0xff]
    %v92 = vld [vmem:[%s1] sm:$0xff]
    %v93 = vld [vmem:[%s1 + $0x8] sm:$0xff]
    %v94 = vld [vmem:[%s1 + $0x10] sm:$0xff]
    %v95 = vld [vmem:[%s1 + $0x18] sm:$0xff]
    %v96 = vld [vmem:[#allocation8] sm:$0xff]
    %v97 = vld [vmem:[#allocation8 + $0x8] sm:$0xff]
    %v98 = vld [vmem:[#allocation8 + $0x10] sm:$0xff]
    %v99 = vld [vmem:[#allocation8 + $0x18] sm:$0xff]
    %v100 = vld [vmem:[#allocation8 + $0x20] sm:$0xff]
    %v101 = vld [vmem:[#allocation8 + $0x28] sm:$0xff]
    %v102 = vld [vmem:[#allocation8 + $0x30] sm:$0xff]
    %v103 = vld [vmem:[#allocation8 + $0x38] sm:$0xff]
    %v104 = vld [vmem:[#allocation8 + $0x40] sm:$0xff]
    %v105 = vld [vmem:[#allocation8 + $0x48] sm:$0xff]
    %v106 = vld [vmem:[#allocation8 + $0x50] sm:$0xff]
    %v107 = vld [vmem:[#allocation8 + $0x58] sm:$0xff]
    %v108 = vld [vmem:[#allocation8 + $0x60] sm:$0xff]
    %v109 = vld [vmem:[#allocation8 + $0x68] sm:$0xff]
    %v110 = vld [vmem:[#allocation8 + $0x70] sm:$0xff]
    %v111 = vld [vmem:[#allocation8 + $0x78] sm:$0xff]
    %113 = vset.pattern.permute.xlu0 0
    %114 = vperm.xlu0 %113, %v92
    %v115 = vpop.permute.xlu0 %114
    %118 = vset.pattern.permute.xlu0 0
    %119 = vperm.xlu0 %118, %v93
    %v120 = vpop.permute.xlu0 %119
    %123 = vset.pattern.permute.xlu0 0
    %124 = vperm.xlu0 %123, %v94
    %v125 = vpop.permute.xlu0 %124
    %128 = vset.pattern.permute.xlu0 0
    %129 = vperm.xlu0 %128, %v95
    %v130 = vpop.permute.xlu0 %129
    %vm132 = vcmask 261120
    %v134 = vsel %vm132, %v88, 0
    %v137 = vsel %vm132, %v89, 0
    %v140 = vsel %vm132, %v90, 0
    %v143 = vsel %vm132, %v91, 0
    %v146 = vsel %vm132, %v96, 0
    %v149 = vsel %vm132, %v97, 0
    %v152 = vsel %vm132, %v98, 0
    %v155 = vsel %vm132, %v99, 0
    %v158 = vsel %vm132, %v100, 0
    %v161 = vsel %vm132, %v101, 0
    %v164 = vsel %vm132, %v102, 0
    %v167 = vsel %vm132, %v103, 0
    %v170 = vsel %vm132, %v104, 0
    %v173 = vsel %vm132, %v105, 0
    %v176 = vsel %vm132, %v106, 0
    %v179 = vsel %vm132, %v107, 0
    %v182 = vsel %vm132, %v108, 0
    %v185 = vsel %vm132, %v109, 0
    %v188 = vsel %vm132, %v110, 0
    %v191 = vsel %vm132, %v111, 0
    %193 = vmatprep.subr.mxu0 0.0
    %194 = vmatpush1.xpose.msra.mxu0 %v146
    %195 = vmatprep.subr.mxu0 0.0
    %196 = vmatpush1.xpose.msra.mxu0 %v149
    %197 = vmatprep.subr.mxu0 0.0
    %198 = vmatpush1.xpose.msra.mxu0 %v152
    %199 = vmatprep.subr.mxu0 0.0
    %200 = vmatpush1.xpose.msra.mxu0 %v155
    %201 = vmatprep.subr.mxu0 0.0
    %202 = vmatpush1.xpose.msra.mxu0 %v158
    %203 = vmatprep.subr.mxu0 0.0
    %204 = vmatpush1.xpose.msra.mxu0 %v161
    %205 = vmatprep.subr.mxu0 0.0
    %206 = vmatpush1.xpose.msra.mxu0 %v164
    %207 = vmatprep.subr.mxu0 0.0
    %208 = vmatpush1.xpose.msra.mxu0 %v167
    %209 = vmatprep.subr.mxu0 0.0
    %210 = vmatpush1.xpose.msra.mxu0 %v170
    %211 = vmatprep.subr.mxu0 0.0
    %212 = vmatpush1.xpose.msra.mxu0 %v173
    %213 = vmatprep.subr.mxu0 0.0
    %214 = vmatpush1.xpose.msra.mxu0 %v176
    %215 = vmatprep.subr.mxu0 0.0
    %216 = vmatpush1.xpose.msra.mxu0 %v179
    %217 = vmatprep.subr.mxu0 0.0
    %218 = vmatpush1.xpose.msra.mxu0 %v182
    %219 = vmatprep.subr.mxu0 0.0
    %220 = vmatpush1.xpose.msra.mxu0 %v185
    %221 = vmatprep.subr.mxu0 0.0
    %222 = vmatpush1.xpose.msra.mxu0 %v188
    %223 = vmatprep.subr.mxu0 0.0
    %224 = vmatpush1.xpose.msra.mxu0 %v191
    %225 = vmatprep.subr.mxu0 0.0
    %226 = vmatpush1.xpose.msra.mxu0 0.0
    %227 = vmatprep.subr.mxu0 0.0
    %228 = vmatpush1.xpose.msra.mxu0 0.0
    %229 = vmatprep.subr.mxu0 0.0
    %230 = vmatpush1.xpose.msra.mxu0 0.0
    %231 = vmatprep.subr.mxu0 0.0
    %232 = vmatpush1.xpose.msra.mxu0 0.0
    %233 = vmatprep.subr.mxu0 0.0
    %234 = vmatpush1.xpose.msra.mxu0 0.0
    %235 = vmatprep.subr.mxu0 0.0
    %236 = vmatpush1.xpose.msra.mxu0 0.0
    %237 = vmatprep.subr.mxu0 0.0
    %238 = vmatpush1.xpose.msra.mxu0 0.0
    %239 = vmatprep.subr.mxu0 0.0
    %240 = vmatpush1.xpose.msra.mxu0 0.0
    %241 = vmatprep.subr.mxu0 0.0
    %242 = vmatpush1.xpose.msra.mxu0 0.0
    %243 = vmatprep.subr.mxu0 0.0
    %244 = vmatpush1.xpose.msra.mxu0 0.0
    %245 = vmatprep.subr.mxu0 0.0
    %246 = vmatpush1.xpose.msra.mxu0 0.0
    %247 = vmatprep.subr.mxu0 0.0
    %248 = vmatpush1.xpose.msra.mxu0 0.0
    %249 = vmatprep.subr.mxu0 0.0
    %250 = vmatpush1.xpose.msra.mxu0 0.0
    %251 = vmatprep.subr.mxu0 0.0
    %252 = vmatpush1.xpose.msra.mxu0 0.0
    %253 = vmatprep.subr.mxu0 0.0
    %254 = vmatpush1.xpose.msra.mxu0 0.0
    %255 = vmatprep.subr.mxu0 0.0
    %256 = vmatpush1.xpose.msra.mxu0 0.0
    %257 = vmatprep.mubr.f32.mxu0 0.0
    %258 = vmatmul.mubr.f32.gmra.mrb[0].mxu0 %v134
    %v259 = vpop.f32.mrb[0].mxu0
    %v260 = vadd.f32 %v115, %v259
    %v261 = vpop.f32.mrb[0].mxu0
    %262 = vmatprep.mubr.f32.mxu0 0.0
    %263 = vmatmul.mubr.f32.gmra.mrb[0].mxu0 %v137
    %v264 = vpop.f32.mrb[0].mxu0
    %v265 = vadd.f32 %v120, %v264
    %v266 = vpop.f32.mrb[0].mxu0
    %267 = vmatprep.mubr.f32.mxu0 0.0
    %268 = vmatmul.mubr.f32.gmra.mrb[0].mxu0 %v140
    %v269 = vpop.f32.mrb[0].mxu0
    %v270 = vadd.f32 %v125, %v269
    %v271 = vpop.f32.mrb[0].mxu0
    %272 = vmatprep.mubr.f32.mxu0 0.0
    %273 = vmatmul.mubr.f32.gmra.mrb[0].mxu0 %v143
    %v274 = vpop.f32.mrb[0].mxu0
    %v275 = vadd.f32 %v130, %v274
    %v276 = vpop.f32.mrb[0].mxu0
    %277 = vdwg.mxu0
    %v278 = vmax.f32 %v260, 0.0
    %v279 = vmax.f32 %v265, 0.0
    %v280 = vmax.f32 %v270, 0.0
    %v281 = vmax.f32 %v275, 0.0
    %v282 = vld [vmem:[%s2] sm:$0xff]
    %v283 = vld [vmem:[%s2 + $0x8] sm:$0xff]
    %v284 = vld [vmem:[%s3] sm:$0xff]
    %v285 = vld [vmem:[%s3 + $0x8] sm:$0xff]
    %287 = vset.pattern.permute.xlu0 0
    %288 = vperm.xlu0 %287, %v284
    %v289 = vpop.permute.xlu0 %288
    %292 = vset.pattern.permute.xlu0 0
    %293 = vperm.xlu0 %292, %v285
    %v294 = vpop.permute.xlu0 %293
    %v297 = vsel %vm132, %v282, 0
    %v300 = vsel %vm132, %v283, 0
    %302 = vmatprep.subr.mxu0 0.0
    %303 = vmatpush1.msra.mxu0 %v278
    %304 = vmatprep.subr.mxu0 0.0
    %305 = vmatpush1.msra.mxu0 %v279
    %306 = vmatprep.subr.mxu0 0.0
    %307 = vmatpush1.msra.mxu0 %v280
    %308 = vmatprep.subr.mxu0 0.0
    %309 = vmatpush1.msra.mxu0 %v281
    %310 = vmatprep.subr.mxu0 0.0
    %311 = vmatpush1.msra.mxu0 0.0
    %312 = vmatprep.subr.mxu0 0.0
    %313 = vmatpush1.msra.mxu0 0.0
    %314 = vmatprep.subr.mxu0 0.0
    %315 = vmatpush1.msra.mxu0 0.0
    %316 = vmatprep.subr.mxu0 0.0
    %317 = vmatpush1.msra.mxu0 0.0
    %318 = vmatprep.subr.mxu0 0.0
    %319 = vmatpush1.msra.mxu0 0.0
    %320 = vmatprep.subr.mxu0 0.0
    %321 = vmatpush1.msra.mxu0 0.0
    %322 = vmatprep.subr.mxu0 0.0
    %323 = vmatpush1.msra.mxu0 0.0
    %324 = vmatprep.subr.mxu0 0.0
    %325 = vmatpush1.msra.mxu0 0.0
    %326 = vmatprep.subr.mxu0 0.0
    %327 = vmatpush1.msra.mxu0 0.0
    %328 = vmatprep.subr.mxu0 0.0
    %329 = vmatpush1.msra.mxu0 0.0
    %330 = vmatprep.subr.mxu0 0.0
    %331 = vmatpush1.msra.mxu0 0.0
    %332 = vmatprep.subr.mxu0 0.0
    %333 = vmatpush1.msra.mxu0 0.0
    %334 = vmatprep.subr.mxu0 0.0
    %335 = vmatpush1.msra.mxu0 0.0
    %336 = vmatprep.subr.mxu0 0.0
    %337 = vmatpush1.msra.mxu0 0.0
    %338 = vmatprep.subr.mxu0 0.0
    %339 = vmatpush1.msra.mxu0 0.0
    %340 = vmatprep.subr.mxu0 0.0
    %341 = vmatpush1.msra.mxu0 0.0
    %342 = vmatprep.subr.mxu0 0.0
    %343 = vmatpush1.msra.mxu0 0.0
    %344 = vmatprep.subr.mxu0 0.0
    %345 = vmatpush1.msra.mxu0 0.0
    %346 = vmatprep.subr.mxu0 0.0
    %347 = vmatpush1.msra.mxu0 0.0
    %348 = vmatprep.subr.mxu0 0.0
    %349 = vmatpush1.msra.mxu0 0.0
    %350 = vmatprep.subr.mxu0 0.0
    %351 = vmatpush1.msra.mxu0 0.0
    %352 = vmatprep.subr.mxu0 0.0
    %353 = vmatpush1.msra.mxu0 0.0
    %354 = vmatprep.subr.mxu0 0.0
    %355 = vmatpush1.msra.mxu0 0.0
    %356 = vmatprep.subr.mxu0 0.0
    %357 = vmatpush1.msra.mxu0 0.0
    %358 = vmatprep.subr.mxu0 0.0
    %359 = vmatpush1.msra.mxu0 0.0
    %360 = vmatprep.subr.mxu0 0.0
    %361 = vmatpush1.msra.mxu0 0.0
    %362 = vmatprep.subr.mxu0 0.0
    %363 = vmatpush1.msra.mxu0 0.0
    %364 = vmatprep.subr.mxu0 0.0
    %365 = vmatpush1.msra.mxu0 0.0
    %366 = vmatprep.mubr.f32.mxu0 0.0
    %367 = vmatmul.mubr.f32.gmra.mrb[0].mxu0 %v297
    %v368 = vpop.f32.mrb[0].mxu0
    %v369 = vadd.f32 %v289, %v368
    %v370 = vpop.f32.mrb[0].mxu0
    %371 = vmatprep.mubr.f32.mxu0 0.0
    %372 = vmatmul.mubr.f32.gmra.mrb[0].mxu0 %v300
    %v373 = vpop.f32.mrb[0].mxu0
    %v374 = vadd.f32 %v294, %v373
    %v375 = vpop.f32.mrb[0].mxu0
    %376 = vdwg.mxu0
    %v377 = vmax.f32 %v369, 0.0
    %v378 = vmax.f32 %v374, 0.0
    %v379 = vld [vmem:[%s4] sm:$0x1]
    %v380 = vld [vmem:[#allocation7] sm:$0x1]
    %382 = vset.pattern.permute.xlu0 0
    %383 = vperm.xlu0 %382, %v380
    %v384 = vpop.permute.xlu0 %383
    %v386 = vlaneseq
    %v387 = vshrl.u32 %v386, 7
    %v388 = vsub.s32 0, %v387
    %v389 = vrot.slane %v384, %v388
    %vm390 = vcmask 130048
    %v392 = vsel %vm390, %v379, 0
    %394 = vmatprep.subr.mxu0 0.0
    %395 = vmatpush1.msra.mxu0 %v377
    %396 = vmatprep.subr.mxu0 0.0
    %397 = vmatpush1.msra.mxu0 %v378
    %398 = vmatprep.subr.mxu0 0.0
    %399 = vmatpush1.msra.mxu0 0.0
    %400 = vmatprep.subr.mxu0 0.0
    %401 = vmatpush1.msra.mxu0 0.0
    %402 = vmatprep.subr.mxu0 0.0
    %403 = vmatpush1.msra.mxu0 0.0
    %404 = vmatprep.subr.mxu0 0.0
    %405 = vmatpush1.msra.mxu0 0.0
    %406 = vmatprep.subr.mxu0 0.0
    %407 = vmatpush1.msra.mxu0 0.0
    %408 = vmatprep.subr.mxu0 0.0
    %409 = vmatpush1.msra.mxu0 0.0
    %410 = vmatprep.subr.mxu0 0.0
    %411 = vmatpush1.msra.mxu0 0.0
    %412 = vmatprep.subr.mxu0 0.0
    %413 = vmatpush1.msra.mxu0 0.0
    %414 = vmatprep.subr.mxu0 0.0
    %415 = vmatpush1.msra.mxu0 0.0
    %416 = vmatprep.subr.mxu0 0.0
    %417 = vmatpush1.msra.mxu0 0.0
    %418 = vmatprep.subr.mxu0 0.0
    %419 = vmatpush1.msra.mxu0 0.0
    %420 = vmatprep.subr.mxu0 0.0
    %421 = vmatpush1.msra.mxu0 0.0
    %422 = vmatprep.subr.mxu0 0.0
    %423 = vmatpush1.msra.mxu0 0.0
    %424 = vmatprep.subr.mxu0 0.0
    %425 = vmatpush1.msra.mxu0 0.0
    %426 = vmatprep.subr.mxu0 0.0
    %427 = vmatpush1.msra.mxu0 0.0
    %428 = vmatprep.subr.mxu0 0.0
    %429 = vmatpush1.msra.mxu0 0.0
    %430 = vmatprep.subr.mxu0 0.0
    %431 = vmatpush1.msra.mxu0 0.0
    %432 = vmatprep.subr.mxu0 0.0
    %433 = vmatpush1.msra.mxu0 0.0
    %434 = vmatprep.subr.mxu0 0.0
    %435 = vmatpush1.msra.mxu0 0.0
    %436 = vmatprep.subr.mxu0 0.0
    %437 = vmatpush1.msra.mxu0 0.0
    %438 = vmatprep.subr.mxu0 0.0
    %439 = vmatpush1.msra.mxu0 0.0
    %440 = vmatprep.subr.mxu0 0.0
    %441 = vmatpush1.msra.mxu0 0.0
    %442 = vmatprep.subr.mxu0 0.0
    %443 = vmatpush1.msra.mxu0 0.0
    %444 = vmatprep.subr.mxu0 0.0
    %445 = vmatpush1.msra.mxu0 0.0
    %446 = vmatprep.subr.mxu0 0.0
    %447 = vmatpush1.msra.mxu0 0.0
    %448 = vmatprep.subr.mxu0 0.0
    %449 = vmatpush1.msra.mxu0 0.0
    %450 = vmatprep.subr.mxu0 0.0
    %451 = vmatpush1.msra.mxu0 0.0
    %452 = vmatprep.subr.mxu0 0.0
    %453 = vmatpush1.msra.mxu0 0.0
    %454 = vmatprep.subr.mxu0 0.0
    %455 = vmatpush1.msra.mxu0 0.0
    %456 = vmatprep.subr.mxu0 0.0
    %457 = vmatpush1.msra.mxu0 0.0
    %458 = vmatprep.mubr.f32.mxu0 0.0
    %459 = vmatmul.mubr.f32.gmra.mrb[0].mxu0 %v392
    %v460 = vpop.f32.mrb[0].mxu0
    %v461 = vadd.f32 %v389, %v460
    %v462 = vpop.f32.mrb[0].mxu0
    %463 = vdwg.mxu0
    %464 = vst [vmem:[%s8] sm:$0x1] %v461
    // Predicated region
    $region30: #{continuation_regressive_forward.2} parent=1 // pred_check
      _
    $region31: #{continuation_regressive_forward.2} parent=1 // pred_check_branch
      %466 = sbr.rel (0) target = $region33
    $region32: #{continuation_regressive_forward.2} parent=1 // pred_region
      _
    $region33: #{continuation_regressive_forward.2} parent=1 // pred_fallthru
      _
    // Predicated region
    $region34: #{continuation_regressive_forward.2} parent=1 // pred_check
      _
    $region35: #{continuation_regressive_forward.2} parent=1 // pred_check_branch
      %468 = sbr.rel (0) target = $region37
    $region36: #{continuation_regressive_forward.2} parent=1 // pred_region
      _
    $region37: #{continuation_regressive_forward.2} parent=1 // pred_fallthru
      _

</llo_original>
